<compile_context>
chip_gen: v7x
topology: tpu7x:2x2x1
jax: 0.10.0
libtpu: 0.0.40
codegen_flags: <defaults>
</compile_context>

<pallas_src>
import functools

import jax
import jax.numpy as jnp
from jax.experimental import pallas as pl
from jax.experimental.pallas import tpu as pltpu

BN_EPS = 1e-5
OUT_PAD = 128      # lane-dense output slab width
SUBLANE = 8
LANE = 128


def _round_up(x, m):
    return ((x + m - 1) // m) * m


def _head_kernel(y_range, inv_hw,
                 x_ref,
                 w1t_ref, w1b_ref, b1_ref,
                 w2_ref, b2_ref,
                 w3_ref, b3_ref,
                 o_ref):
    # x tile: (TILE_N, C, HW) in the backbone's native NCHW layout (HW on lanes).
    xin = x_ref[...]

    # AdaptiveConcatPool2d(1) + Flatten == [max-pool, avg-pool] over spatial,
    # as lane (XLU) reductions. Max is exact in the native dtype (no tile-sized
    # f32 temp); the mean sum accumulates in f32.
    mx = jnp.max(xin, axis=-1).astype(jnp.float32)                # (TILE_N, C)
    avg = jnp.sum(xin.astype(jnp.float32), axis=-1) * inv_hw      # (TILE_N, C)

    # BatchNorm1d(final_size) (eval; folded into w1/b1 on host) + Dropout(identity)
    # + Linear(final_size, final_size // 2). concat([mx, avg]) @ W1 is done as
    # two matmuls against the pre-split halves of W1 (no lane concat). Weights
    # may be bf16; activations are cast just before the MXU, accumulation f32.
    wdt = w1t_ref.dtype
    h = (jnp.dot(mx.astype(wdt), w1t_ref[...], preferred_element_type=jnp.float32)
         + jnp.dot(avg.astype(wdt), w1b_ref[...], preferred_element_type=jnp.float32)
         + b1_ref[...])
    h = jnp.maximum(h, 0.0)                                       # ReLU (f32, VPU)

    # BatchNorm1d(final_size // 2) (eval; folded into w2/b2) + Dropout(identity)
    # + Linear(final_size // 2, 16) + ReLU.
    h = jnp.dot(h.astype(w2_ref.dtype), w2_ref[...],
                preferred_element_type=jnp.float32) + b2_ref[...]
    h = jnp.maximum(h, 0.0)

    # Linear(16, 1), zero-padded to OUT_PAD lanes for lane-dense stores.
    out = jnp.dot(h, w3_ref[...], preferred_element_type=jnp.float32) + b3_ref[...]

    if y_range is not None:
        lo, hi = y_range
        out = (hi - lo) * jax.nn.sigmoid(out) + lo

    o_ref[...] = out


def fold_params(params, final_size, weight_dtype=jnp.bfloat16):
    """Fold eval-mode BatchNorms into the linear layers; pre-split / pad weights.

    weight_dtype applies to the two big matmul weights (w1 halves, w2); biases
    and the tiny final layer stay f32.
    """
    C = final_size // 2

    s1 = params["bn1_g"] * jax.lax.rsqrt(params["bn1_v"] + BN_EPS)      # (1, final_size)
    t1 = params["bn1_b"] - params["bn1_m"] * s1
    w1f = params["w1"] * s1.reshape(-1, 1)                              # (final_size, h1)
    b1f = t1 @ params["w1"] + params["b1"]                              # (1, h1)

    s2 = params["bn2_g"] * jax.lax.rsqrt(params["bn2_v"] + BN_EPS)      # (1, h1)
    t2 = params["bn2_b"] - params["bn2_m"] * s2
    w2f = params["w2"] * s2.reshape(-1, 1)                              # (h1, 16)
    b2f = t2 @ params["w2"] + params["b2"]                              # (1, 16)

    w3p = jnp.zeros((16, OUT_PAD), jnp.float32).at[:, 0:1].set(params["w3"])
    b3p = jnp.zeros((1, OUT_PAD), jnp.float32).at[:, 0:1].set(params["b3"])

    return {
        "w1_top": w1f[:C].astype(weight_dtype),
        "w1_bot": w1f[C:].astype(weight_dtype),
        "b1": b1f,
        "w2": w2f.astype(weight_dtype), "b2": b2f,
        "w3": w3p, "b3": b3p,
    }


def _vmem_capacity_bytes():
    try:
        return int(pltpu.get_tpu_info().vmem_capacity_bytes)
    except Exception:
        return 64 * 1024 * 1024   # conservative fallback (v7x per-TC)


def _padded_bytes_2d(shape, dtype):
    r, c = shape
    return _round_up(r, SUBLANE) * _round_up(c, LANE) * jnp.dtype(dtype).itemsize


def _pick_tile_n(N, C, HW, x_itemsize, weight_bytes):
    """Largest batch tile that fits a complete VMEM model on this generation."""
    cap = _vmem_capacity_bytes()
    budget = int(cap * 0.75)                       # leave compiler headroom

    c_pad = _round_up(C, SUBLANE)
    hw_pad = _round_up(HW, LANE)
    row_native = c_pad * hw_pad * x_itemsize       # one input row in VMEM (lane-padded)
    row_f32_tmp = c_pad * hw_pad * 4 if x_itemsize < 4 else 0   # .astype(f32) temp for the mean
    row_out = 2 * OUT_PAD * 4                      # double-buffered output rows
    per_row = 2 * row_native + row_f32_tmp + row_out

    avail = max(budget - weight_bytes, per_row * SUBLANE)
    tile_n = max(SUBLANE, (avail // per_row) // SUBLANE * SUBLANE)
    # Never exceed what's needed.
    tile_n = min(tile_n, _round_up(N, SUBLANE))
    # Keep >= 2 grid steps so the "parallel" batch axis can shard across the
    # two v7x TensorCores (costs ~nothing on single-TC v5e/v6e).
    if N > SUBLANE:
        tile_n = min(tile_n, max(SUBLANE, _round_up(pl.cdiv(N, 2), SUBLANE)))
    tile_n = max(SUBLANE, tile_n)

    est_total = weight_bytes + tile_n * per_row
    vmem_limit = min(cap, max(int(est_total * 1.25) + (8 << 20), 32 << 20))
    return tile_n, vmem_limit


def image_regression_forward(x_nchw, folded, y_range=None, tile_n=None):
    """Forward pass of the ImageRegression head. Returns shape (N,) (squeeze(-1))."""
    N, C, H, W = x_nchw.shape
    HW = H * W
    h1 = folded["w1_top"].shape[1]

    # Native NCHW layout, flattened spatial on the lane axis. No transpose, no pad.
    x = x_nchw.reshape(N, C, HW)
    itemsize = jnp.dtype(x.dtype).itemsize

    weights = (
        folded["w1_top"], folded["w1_bot"], folded["b1"],
        folded["w2"], folded["b2"],
        folded["w3"], folded["b3"],
    )
    weight_bytes = sum(_padded_bytes_2d(w.shape, w.dtype) for w in weights)

    auto_tile_n, vmem_limit = _pick_tile_n(N, C, HW, itemsize, weight_bytes)
    if tile_n is None:
        tile_n = auto_tile_n
    tile_n = max(SUBLANE, (tile_n // SUBLANE) * SUBLANE)

    grid = (pl.cdiv(N, tile_n),)   # ragged last block reads past the end; rows independent

    # Grid-invariant weights: single-buffered (no pipelining needed).
    weight_specs = [
        pl.BlockSpec(w.shape, lambda i: (0, 0), pipeline_mode=pl.Buffered(1))
        for w in weights
    ]

    flops = int(2 * N * HW * C                 # max + mean pools
                + 2 * N * C * h1 * 2           # two half matmuls (== 2C x h1)
                + 2 * N * h1 * 16
                + 2 * N * 16 * OUT_PAD)
    transcendentals = int(N if y_range is not None else 0)
    bytes_accessed = int(N * HW * C * itemsize
                         + sum(int(w.size) * jnp.dtype(w.dtype).itemsize for w in weights)
                         + N * OUT_PAD * 4)

    out = pl.pallas_call(
        functools.partial(_head_kernel, y_range, 1.0 / float(HW)),
        out_shape=jax.ShapeDtypeStruct((N, OUT_PAD), jnp.float32),
        grid=grid,
        in_specs=[pl.BlockSpec((tile_n, C, HW), lambda i: (i, 0, 0))] + weight_specs,
        out_specs=pl.BlockSpec((tile_n, OUT_PAD), lambda i: (i, 0)),
        compiler_params=pltpu.CompilerParams(
            dimension_semantics=("parallel",),
            vmem_limit_bytes=int(vmem_limit),
        ),
        cost_estimate=pl.CostEstimate(
            flops=flops,
            transcendentals=transcendentals,
            bytes_accessed=bytes_accessed,
        ),
    )(x, *weights)

    return out[:N, 0]   # .squeeze(-1)


def init_params(final_size, key):
    """Deterministic parameter init matching the nn.Module shapes."""
    h1 = final_size // 2
    ks = jax.random.split(key, 6)

    def linear(kw, kb, fan_in, fan_out):
        bound = 1.0 / (fan_in ** 0.5)
        w = jax.random.uniform(kw, (fan_in, fan_out), jnp.float32, -bound, bound)
        b = jax.random.uniform(kb, (1, fan_out), jnp.float32, -bound, bound)
        return w, b

    kw1, kb1, kw2, kb2, kw3, kb3 = ks
    w1, b1 = linear(kw1, kb1, final_size, h1)
    w2, b2 = linear(kw2, kb2, h1, 16)
    w3, b3 = linear(kw3, kb3, 16, 1)

    return {
        # BatchNorm1d(final_size): gamma=1, beta=0, running_mean=0, running_var=1
        "bn1_g": jnp.ones((1, final_size), jnp.float32),
        "bn1_b": jnp.zeros((1, final_size), jnp.float32),
        "bn1_m": jnp.zeros((1, final_size), jnp.float32),
        "bn1_v": jnp.ones((1, final_size), jnp.float32),
        "w1": w1, "b1": b1,
        # BatchNorm1d(final_size // 2)
        "bn2_g": jnp.ones((1, h1), jnp.float32),
        "bn2_b": jnp.zeros((1, h1), jnp.float32),
        "bn2_m": jnp.zeros((1, h1), jnp.float32),
        "bn2_v": jnp.ones((1, h1), jnp.float32),
        "w2": w2, "b2": b2,
        "w3": w3, "b3": b3,
    }


def reference_forward(x_nchw, params, y_range=None):
    """Pure-JAX reference (un-folded, matches the nn.Module in eval mode)."""
    N, C, H, W = x_nchw.shape
    x = x_nchw.reshape(N, C, H * W).astype(jnp.float32)
    mx = jnp.max(x, axis=-1)
    avg = jnp.mean(x, axis=-1)
    feat = jnp.concatenate([mx, avg], axis=-1)
    h = (feat - params["bn1_m"]) * jax.lax.rsqrt(params["bn1_v"] + BN_EPS) * params["bn1_g"] + params["bn1_b"]
    h = jnp.maximum(h @ params["w1"] + params["b1"], 0.0)
    h = (h - params["bn2_m"]) * jax.lax.rsqrt(params["bn2_v"] + BN_EPS) * params["bn2_g"] + params["bn2_b"]
    h = jnp.maximum(h @ params["w2"] + params["b2"], 0.0)
    out = h @ params["w3"] + params["b3"]
    if y_range is not None:
        lo, hi = y_range
        out = (hi - lo) * jax.nn.sigmoid(out) + lo
    return out[:, 0]


if __name__ == "__main__":
    key = jax.random.PRNGKey(0)
    kx, kp = jax.random.split(key)

    # Small shapes: backbone feature map (N=2, C=16, H=W=16) -> final_size = 2*C = 32.
    N, C, H, W = 2, 16, 16, 16
    final_size = 2 * C
    y_range = (0.0, 5.0)

    x = jax.random.normal(kx, (N, C, H, W), jnp.float32)
    params = init_params(final_size, kp)
    ref = reference_forward(x, params, y_range=y_range)

    # 1) Exact-math check: f32 weights — must match the eval-mode module tightly.
    folded_f32 = fold_params(params, final_size, weight_dtype=jnp.float32)
    out_f32 = jax.block_until_ready(image_regression_forward(x, folded_f32, y_range=y_range))
    assert out_f32.shape == (N,), out_f32.shape
    assert jnp.allclose(out_f32, ref, atol=1e-4, rtol=1e-4), (out_f32, ref)

    # 2) Production path: bf16 matmul weights on the MXU (looser tolerance).
    folded_bf16 = fold_params(params, final_size, weight_dtype=jnp.bfloat16)
    out_bf16 = jax.block_until_ready(image_regression_forward(x, folded_bf16, y_range=y_range))
    assert out_bf16.shape == (N,), out_bf16.shape
    assert jnp.allclose(out_bf16, ref, atol=3e-2, rtol=3e-2), (out_bf16, ref)

    print("KERNEL_OK")
</pallas_src>

<mosaic_0001>
module attributes {stable_mosaic.version = 11 : i64} {
  func.func @_head_kernel(%arg0: i32, %arg1: memref<8x16x256xf32, #tpu.memory_space<vmem>>, %arg2: memref<16x16xf32, #tpu.memory_space<vmem>>, %arg3: memref<16x16xf32, #tpu.memory_space<vmem>>, %arg4: memref<1x16xf32, #tpu.memory_space<vmem>>, %arg5: memref<16x16xf32, #tpu.memory_space<vmem>>, %arg6: memref<1x16xf32, #tpu.memory_space<vmem>>, %arg7: memref<16x128xf32, #tpu.memory_space<vmem>>, %arg8: memref<1x128xf32, #tpu.memory_space<vmem>>, %arg9: memref<8x128xf32, #tpu.memory_space<vmem>>) attributes {dimension_semantics = [#tpu.dimension_semantics<parallel>], iteration_bounds = array<i64: 1>, scalar_prefetch = 0 : i64, scratch_operands = 0 : i64, tpu.core_type = #tpu.core_type<tc>, window_params = [{transform_indices = @transform_0, window_bounds = array<i64: 8, 16, 256>}, {pipeline_mode = #tpu.pipeline_mode<synchronous>, transform_indices = @transform_1, window_bounds = array<i64: 16, 16>}, {pipeline_mode = #tpu.pipeline_mode<synchronous>, transform_indices = @transform_2, window_bounds = array<i64: 16, 16>}, {pipeline_mode = #tpu.pipeline_mode<synchronous>, transform_indices = @transform_3, window_bounds = array<i64: 1, 16>}, {pipeline_mode = #tpu.pipeline_mode<synchronous>, transform_indices = @transform_4, window_bounds = array<i64: 16, 16>}, {pipeline_mode = #tpu.pipeline_mode<synchronous>, transform_indices = @transform_5, window_bounds = array<i64: 1, 16>}, {pipeline_mode = #tpu.pipeline_mode<synchronous>, transform_indices = @transform_6, window_bounds = array<i64: 16, 128>}, {pipeline_mode = #tpu.pipeline_mode<synchronous>, transform_indices = @transform_7, window_bounds = array<i64: 1, 128>}, {transform_indices = @transform_8, window_bounds = array<i64: 8, 128>}]} {
    %c0 = arith.constant 0 : index
    %c0_0 = arith.constant 0 : index
    %c0_1 = arith.constant 0 : index
    %0 = vector.load %arg1[%c0, %c0_0, %c0_1] : memref<8x16x256xf32, #tpu.memory_space<vmem>>, vector<8x16x256xf32>
    %cst = arith.constant dense<0xFF800000> : vector<8x16xf32>
    %1 = vector.multi_reduction <maximumf>, %0, %cst [2] : vector<8x16x256xf32> to vector<8x16xf32>
    %cst_2 = arith.constant dense<0.000000e+00> : vector<8x16xf32>
    %2 = vector.multi_reduction <add>, %0, %cst_2 [2] : vector<8x16x256xf32> to vector<8x16xf32>
    %cst_3 = arith.constant 3.906250e-03 : f32
    %3 = vector.broadcast %cst_3 : f32 to vector<8x16xf32>
    %4 = arith.mulf %2, %3 : vector<8x16xf32>
    %c0_4 = arith.constant 0 : index
    %c0_5 = arith.constant 0 : index
    %5 = vector.load %arg2[%c0_4, %c0_5] : memref<16x16xf32, #tpu.memory_space<vmem>>, vector<16x16xf32>
    %cst_6 = arith.constant dense<0.000000e+00> : vector<8x16xf32>
    %6 = tpu.matmul %1, %5, %cst_6 {dimension_numbers = #tpu.dot_dimension_numbers<[1], [0], [0], [1], [0, 0, 1, 1], [], []>} : vector<8x16xf32>, vector<16x16xf32>, vector<8x16xf32> -> vector<8x16xf32>
    %c0_7 = arith.constant 0 : index
    %c0_8 = arith.constant 0 : index
    %7 = vector.load %arg3[%c0_7, %c0_8] : memref<16x16xf32, #tpu.memory_space<vmem>>, vector<16x16xf32>
    %cst_9 = arith.constant dense<0.000000e+00> : vector<8x16xf32>
    %8 = tpu.matmul %4, %7, %cst_9 {dimension_numbers = #tpu.dot_dimension_numbers<[1], [0], [0], [1], [0, 0, 1, 1], [], []>} : vector<8x16xf32>, vector<16x16xf32>, vector<8x16xf32> -> vector<8x16xf32>
    %9 = arith.addf %6, %8 : vector<8x16xf32>
    %c0_10 = arith.constant 0 : index
    %c0_11 = arith.constant 0 : index
    %10 = vector.load %arg4[%c0_10, %c0_11] : memref<1x16xf32, #tpu.memory_space<vmem>>, vector<1x16xf32>
    %11 = vector.broadcast %10 : vector<1x16xf32> to vector<8x16xf32>
    %12 = arith.addf %9, %11 : vector<8x16xf32>
    %cst_12 = arith.constant 0.000000e+00 : f32
    %13 = vector.broadcast %cst_12 : f32 to vector<8x16xf32>
    %14 = arith.maximumf %12, %13 : vector<8x16xf32>
    %c0_13 = arith.constant 0 : index
    %c0_14 = arith.constant 0 : index
    %15 = vector.load %arg5[%c0_13, %c0_14] : memref<16x16xf32, #tpu.memory_space<vmem>>, vector<16x16xf32>
    %cst_15 = arith.constant dense<0.000000e+00> : vector<8x16xf32>
    %16 = tpu.matmul %14, %15, %cst_15 {dimension_numbers = #tpu.dot_dimension_numbers<[1], [0], [0], [1], [0, 0, 1, 1], [], []>} : vector<8x16xf32>, vector<16x16xf32>, vector<8x16xf32> -> vector<8x16xf32>
    %c0_16 = arith.constant 0 : index
    %c0_17 = arith.constant 0 : index
    %17 = vector.load %arg6[%c0_16, %c0_17] : memref<1x16xf32, #tpu.memory_space<vmem>>, vector<1x16xf32>
    %18 = vector.broadcast %17 : vector<1x16xf32> to vector<8x16xf32>
    %19 = arith.addf %16, %18 : vector<8x16xf32>
    %cst_18 = arith.constant 0.000000e+00 : f32
    %20 = vector.broadcast %cst_18 : f32 to vector<8x16xf32>
    %21 = arith.maximumf %19, %20 : vector<8x16xf32>
    %c0_19 = arith.constant 0 : index
    %c0_20 = arith.constant 0 : index
    %22 = vector.load %arg7[%c0_19, %c0_20] : memref<16x128xf32, #tpu.memory_space<vmem>>, vector<16x128xf32>
    %cst_21 = arith.constant dense<0.000000e+00> : vector<8x128xf32>
    %23 = tpu.matmul %21, %22, %cst_21 {dimension_numbers = #tpu.dot_dimension_numbers<[1], [0], [0], [1], [0, 0, 1, 1], [], []>} : vector<8x16xf32>, vector<16x128xf32>, vector<8x128xf32> -> vector<8x128xf32>
    %c0_22 = arith.constant 0 : index
    %c0_23 = arith.constant 0 : index
    %24 = vector.load %arg8[%c0_22, %c0_23] : memref<1x128xf32, #tpu.memory_space<vmem>>, vector<1x128xf32>
    %25 = vector.broadcast %24 : vector<1x128xf32> to vector<8x128xf32>
    %26 = arith.addf %23, %25 : vector<8x128xf32>
    %27 = arith.negf %26 : vector<8x128xf32>
    %28 = math.exp %27 : vector<8x128xf32>
    %cst_24 = arith.constant 1.000000e+00 : f32
    %29 = vector.broadcast %cst_24 : f32 to vector<8x128xf32>
    %30 = arith.addf %29, %28 : vector<8x128xf32>
    %31 = arith.divf %29, %30 : vector<8x128xf32>
    %cst_25 = arith.constant 5.000000e+00 : f32
    %32 = vector.broadcast %cst_25 : f32 to vector<8x128xf32>
    %33 = arith.mulf %32, %31 : vector<8x128xf32>
    %cst_26 = arith.constant 0.000000e+00 : f32
    %34 = vector.broadcast %cst_26 : f32 to vector<8x128xf32>
    %35 = arith.addf %33, %34 : vector<8x128xf32>
    %c0_27 = arith.constant 0 : index
    %c0_28 = arith.constant 0 : index
    %36 = vector.load %arg9[%c0_27, %c0_28] : memref<8x128xf32, #tpu.memory_space<vmem>>, vector<8x128xf32>
    tpu.vector_store %arg9[%c0_27, %c0_28], %35 {strides = array<i32>} : memref<8x128xf32, #tpu.memory_space<vmem>>, vector<8x128xf32>,
    return
  }
  func.func @transform_0(%arg0: i32) -> (i32, i32, i32) {
    %c0_i32 = arith.constant 0 : i32
    %c0_i32_0 = arith.constant 0 : i32
    %c0_i32_1 = arith.constant 0 : i32
    return %arg0, %c0_i32, %c0_i32_0 : i32, i32, i32
  }
  func.func @transform_1(%arg0: i32) -> (i32, i32) {
    %c0_i32 = arith.constant 0 : i32
    %c0_i32_0 = arith.constant 0 : i32
    %c0_i32_1 = arith.constant 0 : i32
    return %c0_i32, %c0_i32_0 : i32, i32
  }
  func.func @transform_2(%arg0: i32) -> (i32, i32) {
    %c0_i32 = arith.constant 0 : i32
    %c0_i32_0 = arith.constant 0 : i32
    %c0_i32_1 = arith.constant 0 : i32
    return %c0_i32, %c0_i32_0 : i32, i32
  }
  func.func @transform_3(%arg0: i32) -> (i32, i32) {
    %c0_i32 = arith.constant 0 : i32
    %c0_i32_0 = arith.constant 0 : i32
    %c0_i32_1 = arith.constant 0 : i32
    return %c0_i32, %c0_i32_0 : i32, i32
  }
  func.func @transform_4(%arg0: i32) -> (i32, i32) {
    %c0_i32 = arith.constant 0 : i32
    %c0_i32_0 = arith.constant 0 : i32
    %c0_i32_1 = arith.constant 0 : i32
    return %c0_i32, %c0_i32_0 : i32, i32
  }
  func.func @transform_5(%arg0: i32) -> (i32, i32) {
    %c0_i32 = arith.constant 0 : i32
    %c0_i32_0 = arith.constant 0 : i32
    %c0_i32_1 = arith.constant 0 : i32
    return %c0_i32, %c0_i32_0 : i32, i32
  }
  func.func @transform_6(%arg0: i32) -> (i32, i32) {
    %c0_i32 = arith.constant 0 : i32
    %c0_i32_0 = arith.constant 0 : i32
    %c0_i32_1 = arith.constant 0 : i32
    return %c0_i32, %c0_i32_0 : i32, i32
  }
  func.func @transform_7(%arg0: i32) -> (i32, i32) {
    %c0_i32 = arith.constant 0 : i32
    %c0_i32_0 = arith.constant 0 : i32
    %c0_i32_1 = arith.constant 0 : i32
    return %c0_i32, %c0_i32_0 : i32, i32
  }
  func.func @transform_8(%arg0: i32) -> (i32, i32) {
    %c0_i32 = arith.constant 0 : i32
    %c0_i32_0 = arith.constant 0 : i32
    return %arg0, %c0_i32 : i32, i32
  }
}

</mosaic_0001>

<llo_original>
// kernel: tpu_custom_call.1
$region0: #{tpu_custom_call.1}
  #allocation0 [shape = 'u32[]', space=smem, size = 0x4, offset = 0x4, fixed_abs, tag = 'smem constant byte address 0x4 - core index']
  #allocation1 [shape = 'u32[144,128]{1,0:T(1,128)}', space=vmem, size = 0x12000, scoped, tag = 'internal scratch']
  %s0 = inlined_call_operand.hbm [shape: f32[2,16,256], index: 0, kind: input, shape index: {}]
  %s1 = inlined_call_operand.hbm [shape: f32[16,16], index: 1, kind: input, shape index: {}]
  %s2 = inlined_call_operand.hbm [shape: f32[16,16], index: 2, kind: input, shape index: {}]
  %s3 = inlined_call_operand.vmem [shape: f32[1,16], index: 3, kind: input, shape index: {}]
  %s4 = inlined_call_operand.hbm [shape: f32[16,16], index: 4, kind: input, shape index: {}]
  %s5 = inlined_call_operand.vmem [shape: f32[1,16], index: 5, kind: input, shape index: {}]
  %s6 = inlined_call_operand.vmem [shape: f32[16,128], index: 6, kind: input, shape index: {}]
  %s7 = inlined_call_operand.vmem [shape: f32[1,128], index: 7, kind: input, shape index: {}]
  %s8 = inlined_call_operand.hbm [shape: f32[2,128], index: 8, kind: output, shape index: {}]
  %s9 = sld [smem:[#allocation0]]
  $region58: #{tpu_custom_call.1} parent=0
    _
  %s11 = ssub.s32 1, %s9
  %s12 = scalar_select 0, %s11, %s9
  $region1: #{tpu_custom_call.1} parent=0
    #allocation2 [shape = 'u8[131072]{0}', space=vmem, size = 0x20000, scoped, tag = 'input window, operand 0, single buffered']
    #allocation3 [shape = 's32[1]{0}', space=sflag, size = 0x4, scoped, tag = 'scoped memory for tpu_custom_call.1']
    #allocation4 [shape = 's32[1]{0}', space=sflag, size = 0x4, scoped, tag = 'scoped memory for tpu_custom_call.1']
    #allocation5 [shape = 'u8[8192]{0}', space=vmem, size = 0x2000, scoped, tag = 'input window, operand 1, single buffered']
    #allocation6 [shape = 's32[1]{0}', space=sflag, size = 0x4, scoped, tag = 'scoped memory for tpu_custom_call.1']
    #allocation7 [shape = 'u8[8192]{0}', space=vmem, size = 0x2000, scoped, tag = 'input window, operand 2, single buffered']
    #allocation8 [shape = 'u8[8192]{0}', space=vmem, size = 0x2000, scoped, tag = 'input window, operand 4, single buffered']
    #allocation9 [shape = 's32[1]{0}', space=sflag, size = 0x4, scoped, tag = 'scoped memory for tpu_custom_call.1']
    #allocation10 [shape = 'u8[4096]{0}', space=vmem, size = 0x1000, scoped, tag = 'output window, operand 0, single buffered']
    %13 = vsyncpa [#allocation3], 0
    %14 = vsyncpa [#allocation6], 0
    %15 = vsyncpa [#allocation9], 0
    %16 = vsyncpa [#allocation4], 0
    // Predicated region
    $region2: #{tpu_custom_call.1} parent=1 // pred_check
      _
    $region3: #{tpu_custom_call.1} parent=1 // pred_check_branch
      %18 = sbr.rel (0) target = $region5
    $region4: #{tpu_custom_call.1} parent=1 // pred_region
      %s20 = ssub.s32 4096, 1024
      %21 = vsyncadd [#allocation3], %s20
      %s22 = sshll.u32 [#allocation2], 4
      %s23 = int_to_ptr.vmem [resolvable:$true] %s22
      %28 = dma.hbm_to_vmem [thread:$0]  %s0, 1024, %s23, [#allocation3], 256, 256, 16
    $region5: #{tpu_custom_call.1} parent=1 // pred_fallthru
      _
    // Predicated region
    $region6: #{tpu_custom_call.1} parent=1 // pred_check
      _
    $region7: #{tpu_custom_call.1} parent=1 // pred_check_branch
      %30 = sbr.rel (0) target = $region9
    $region8: #{tpu_custom_call.1} parent=1 // pred_region
      %s32 = ssub.s32 256, 256
      %33 = vsyncadd [#allocation6], %s32
      %s34 = sshll.u32 [#allocation5], 4
      %s35 = int_to_ptr.vmem [resolvable:$true] %s34
      %40 = dma.hbm_to_vmem [thread:$0]  %s1, 256, %s35, [#allocation6], 128, 128, 8
    $region9: #{tpu_custom_call.1} parent=1 // pred_fallthru
      _
    // Predicated region
    $region10: #{tpu_custom_call.1} parent=1 // pred_check
      _
    $region11: #{tpu_custom_call.1} parent=1 // pred_check_branch
      %42 = sbr.rel (0) target = $region13
    $region12: #{tpu_custom_call.1} parent=1 // pred_region
      %s44 = ssub.s32 256, 256
      %45 = vsyncadd [#allocation6], %s44
      %s46 = sshll.u32 [#allocation7], 4
      %s47 = int_to_ptr.vmem [resolvable:$true] %s46
      %52 = dma.hbm_to_vmem [thread:$0]  %s2, 256, %s47, [#allocation6], 128, 128, 8
    $region13: #{tpu_custom_call.1} parent=1 // pred_fallthru
      _
    // Predicated region
    $region14: #{tpu_custom_call.1} parent=1 // pred_check
      _
    $region15: #{tpu_custom_call.1} parent=1 // pred_check_branch
      %54 = sbr.rel (0) target = $region17
    $region16: #{tpu_custom_call.1} parent=1 // pred_region
      _
    $region17: #{tpu_custom_call.1} parent=1 // pred_fallthru
      _
    // Predicated region
    $region18: #{tpu_custom_call.1} parent=1 // pred_check
      _
    $region19: #{tpu_custom_call.1} parent=1 // pred_check_branch
      %56 = sbr.rel (0) target = $region21
    $region20: #{tpu_custom_call.1} parent=1 // pred_region
      %s58 = ssub.s32 256, 256
      %59 = vsyncadd [#allocation9], %s58
      %s60 = sshll.u32 [#allocation8], 4
      %s61 = int_to_ptr.vmem [resolvable:$true] %s60
      %66 = dma.hbm_to_vmem [thread:$0]  %s4, 256, %s61, [#allocation9], 128, 128, 8
    $region21: #{tpu_custom_call.1} parent=1 // pred_fallthru
      _
    // Predicated region
    $region22: #{tpu_custom_call.1} parent=1 // pred_check
      _
    $region23: #{tpu_custom_call.1} parent=1 // pred_check_branch
      %68 = sbr.rel (0) target = $region25
    $region24: #{tpu_custom_call.1} parent=1 // pred_region
      _
    $region25: #{tpu_custom_call.1} parent=1 // pred_fallthru
      _
    // Predicated region
    $region26: #{tpu_custom_call.1} parent=1 // pred_check
      _
    $region27: #{tpu_custom_call.1} parent=1 // pred_check_branch
      %70 = sbr.rel (0) target = $region29
    $region28: #{tpu_custom_call.1} parent=1 // pred_region
      _
    $region29: #{tpu_custom_call.1} parent=1 // pred_fallthru
      _
    // Predicated region
    $region30: #{tpu_custom_call.1} parent=1 // pred_check
      _
    $region31: #{tpu_custom_call.1} parent=1 // pred_check_branch
      %72 = sbr.rel (0) target = $region33
    $region32: #{tpu_custom_call.1} parent=1 // pred_region
      _
    $region33: #{tpu_custom_call.1} parent=1 // pred_fallthru
      _
    // Predicated region
    $region34: #{tpu_custom_call.1} parent=1 // pred_check
      _
    $region35: #{tpu_custom_call.1} parent=1 // pred_check_branch
      %74 = sbr.rel (0) target = $region37
    $region36: #{tpu_custom_call.1} parent=1 // pred_region
      %75 = dma.done [#allocation3], 4096
    $region37: #{tpu_custom_call.1} parent=1 // pred_fallthru
      _
    // Predicated region
    $region38: #{tpu_custom_call.1} parent=1 // pred_check
      _
    $region39: #{tpu_custom_call.1} parent=1 // pred_check_branch
      %77 = sbr.rel (0) target = $region41
    $region40: #{tpu_custom_call.1} parent=1 // pred_region
      %78 = dma.done [#allocation6], 256
    $region41: #{tpu_custom_call.1} parent=1 // pred_fallthru
      _
    // Predicated region
    $region42: #{tpu_custom_call.1} parent=1 // pred_check
      _
    $region43: #{tpu_custom_call.1} parent=1 // pred_check_branch
      %80 = sbr.rel (0) target = $region45
    $region44: #{tpu_custom_call.1} parent=1 // pred_region
      %81 = dma.done [#allocation6], 256
    $region45: #{tpu_custom_call.1} parent=1 // pred_fallthru
      _
    // Predicated region
    $region46: #{tpu_custom_call.1} parent=1 // pred_check
      _
    $region47: #{tpu_custom_call.1} parent=1 // pred_check_branch
      %83 = sbr.rel (0) target = $region49
    $region48: #{tpu_custom_call.1} parent=1 // pred_region
      %84 = dma.done [#allocation9], 256
    $region49: #{tpu_custom_call.1} parent=1 // pred_fallthru
      _
    %v85 = vld [vmem:[#allocation2] sm:$0xff]
    %v86 = vld [vmem:[#allocation2 + $0x8] sm:$0xff]
    %v87 = vld [vmem:[#allocation2 + $0x10] sm:$0xff]
    %v88 = vld [vmem:[#allocation2 + $0x18] sm:$0xff]
    %v89 = vld [vmem:[#allocation2 + $0x20] sm:$0xff]
    %v90 = vld [vmem:[#allocation2 + $0x28] sm:$0xff]
    %v91 = vld [vmem:[#allocation2 + $0x30] sm:$0xff]
    %v92 = vld [vmem:[#allocation2 + $0x38] sm:$0xff]
    %v93 = vld [vmem:[#allocation2 + $0x40] sm:$0xff]
    %v94 = vld [vmem:[#allocation2 + $0x48] sm:$0xff]
    %v95 = vld [vmem:[#allocation2 + $0x50] sm:$0xff]
    %v96 = vld [vmem:[#allocation2 + $0x58] sm:$0xff]
    %v97 = vld [vmem:[#allocation2 + $0x60] sm:$0xff]
    %v98 = vld [vmem:[#allocation2 + $0x68] sm:$0xff]
    %v99 = vld [vmem:[#allocation2 + $0x70] sm:$0xff]
    %v100 = vld [vmem:[#allocation2 + $0x78] sm:$0xff]
    %v101 = vld [vmem:[#allocation2 + $0x80] sm:$0xff]
    %v102 = vld [vmem:[#allocation2 + $0x88] sm:$0xff]
    %v103 = vld [vmem:[#allocation2 + $0x90] sm:$0xff]
    %v104 = vld [vmem:[#allocation2 + $0x98] sm:$0xff]
    %v105 = vld [vmem:[#allocation2 + $0xa0] sm:$0xff]
    %v106 = vld [vmem:[#allocation2 + $0xa8] sm:$0xff]
    %v107 = vld [vmem:[#allocation2 + $0xb0] sm:$0xff]
    %v108 = vld [vmem:[#allocation2 + $0xb8] sm:$0xff]
    %v109 = vld [vmem:[#allocation2 + $0xc0] sm:$0xff]
    %v110 = vld [vmem:[#allocation2 + $0xc8] sm:$0xff]
    %v111 = vld [vmem:[#allocation2 + $0xd0] sm:$0xff]
    %v112 = vld [vmem:[#allocation2 + $0xd8] sm:$0xff]
    %v113 = vld [vmem:[#allocation2 + $0xe0] sm:$0xff]
    %v114 = vld [vmem:[#allocation2 + $0xe8] sm:$0xff]
    %v115 = vld [vmem:[#allocation2 + $0xf0] sm:$0xff]
    %v116 = vld [vmem:[#allocation2 + $0xf8] sm:$0xff]
    %v117 = vmax.f32 %v85, %v86
    %118 = vmax.xlane.f32.xlu0 %v117
    %v119 = vpop.xlane.xlu0 %118
    %v120 = vmax.f32 %v87, %v88
    %121 = vmax.xlane.f32.xlu0 %v120
    %v122 = vpop.xlane.xlu0 %121
    %v123 = vmax.f32 %v89, %v90
    %124 = vmax.xlane.f32.xlu0 %v123
    %v125 = vpop.xlane.xlu0 %124
    %v126 = vmax.f32 %v91, %v92
    %127 = vmax.xlane.f32.xlu0 %v126
    %v128 = vpop.xlane.xlu0 %127
    %v129 = vmax.f32 %v93, %v94
    %130 = vmax.xlane.f32.xlu0 %v129
    %v131 = vpop.xlane.xlu0 %130
    %v132 = vmax.f32 %v95, %v96
    %133 = vmax.xlane.f32.xlu0 %v132
    %v134 = vpop.xlane.xlu0 %133
    %v135 = vmax.f32 %v97, %v98
    %136 = vmax.xlane.f32.xlu0 %v135
    %v137 = vpop.xlane.xlu0 %136
    %v138 = vmax.f32 %v99, %v100
    %139 = vmax.xlane.f32.xlu0 %v138
    %v140 = vpop.xlane.xlu0 %139
    %v141 = vmax.f32 %v101, %v102
    %142 = vmax.xlane.f32.xlu0 %v141
    %v143 = vpop.xlane.xlu0 %142
    %v144 = vmax.f32 %v103, %v104
    %145 = vmax.xlane.f32.xlu0 %v144
    %v146 = vpop.xlane.xlu0 %145
    %v147 = vmax.f32 %v105, %v106
    %148 = vmax.xlane.f32.xlu0 %v147
    %v149 = vpop.xlane.xlu0 %148
    %v150 = vmax.f32 %v107, %v108
    %151 = vmax.xlane.f32.xlu0 %v150
    %v152 = vpop.xlane.xlu0 %151
    %v153 = vmax.f32 %v109, %v110
    %154 = vmax.xlane.f32.xlu0 %v153
    %v155 = vpop.xlane.xlu0 %154
    %v156 = vmax.f32 %v111, %v112
    %157 = vmax.xlane.f32.xlu0 %v156
    %v158 = vpop.xlane.xlu0 %157
    %v159 = vmax.f32 %v113, %v114
    %160 = vmax.xlane.f32.xlu0 %v159
    %v161 = vpop.xlane.xlu0 %160
    %v162 = vmax.f32 %v115, %v116
    %163 = vmax.xlane.f32.xlu0 %v162
    %v164 = vpop.xlane.xlu0 %163
    %v165 = vadd.f32 %v85, %v86
    %166 = vadd.xlane.f32.xlu0 %v165
    %v167 = vpop.xlane.xlu0 %166
    %v168 = vadd.f32 %v87, %v88
    %169 = vadd.xlane.f32.xlu0 %v168
    %v170 = vpop.xlane.xlu0 %169
    %v171 = vadd.f32 %v89, %v90
    %172 = vadd.xlane.f32.xlu0 %v171
    %v173 = vpop.xlane.xlu0 %172
    %v174 = vadd.f32 %v91, %v92
    %175 = vadd.xlane.f32.xlu0 %v174
    %v176 = vpop.xlane.xlu0 %175
    %v177 = vadd.f32 %v93, %v94
    %178 = vadd.xlane.f32.xlu0 %v177
    %v179 = vpop.xlane.xlu0 %178
    %v180 = vadd.f32 %v95, %v96
    %181 = vadd.xlane.f32.xlu0 %v180
    %v182 = vpop.xlane.xlu0 %181
    %v183 = vadd.f32 %v97, %v98
    %184 = vadd.xlane.f32.xlu0 %v183
    %v185 = vpop.xlane.xlu0 %184
    %v186 = vadd.f32 %v99, %v100
    %187 = vadd.xlane.f32.xlu0 %v186
    %v188 = vpop.xlane.xlu0 %187
    %v189 = vadd.f32 %v101, %v102
    %190 = vadd.xlane.f32.xlu0 %v189
    %v191 = vpop.xlane.xlu0 %190
    %v192 = vadd.f32 %v103, %v104
    %193 = vadd.xlane.f32.xlu0 %v192
    %v194 = vpop.xlane.xlu0 %193
    %v195 = vadd.f32 %v105, %v106
    %196 = vadd.xlane.f32.xlu0 %v195
    %v197 = vpop.xlane.xlu0 %196
    %v198 = vadd.f32 %v107, %v108
    %199 = vadd.xlane.f32.xlu0 %v198
    %v200 = vpop.xlane.xlu0 %199
    %v201 = vadd.f32 %v109, %v110
    %202 = vadd.xlane.f32.xlu0 %v201
    %v203 = vpop.xlane.xlu0 %202
    %v204 = vadd.f32 %v111, %v112
    %205 = vadd.xlane.f32.xlu0 %v204
    %v206 = vpop.xlane.xlu0 %205
    %v207 = vadd.f32 %v113, %v114
    %208 = vadd.xlane.f32.xlu0 %v207
    %v209 = vpop.xlane.xlu0 %208
    %v210 = vadd.f32 %v115, %v116
    %211 = vadd.xlane.f32.xlu0 %v210
    %v212 = vpop.xlane.xlu0 %211
    %v213 = vmul.f32 %v167, 0.00390625
    %v214 = vmul.f32 %v170, 0.00390625
    %v215 = vmul.f32 %v173, 0.00390625
    %v216 = vmul.f32 %v176, 0.00390625
    %v217 = vmul.f32 %v179, 0.00390625
    %v218 = vmul.f32 %v182, 0.00390625
    %v219 = vmul.f32 %v185, 0.00390625
    %v220 = vmul.f32 %v188, 0.00390625
    %v221 = vmul.f32 %v191, 0.00390625
    %v222 = vmul.f32 %v194, 0.00390625
    %v223 = vmul.f32 %v197, 0.00390625
    %v224 = vmul.f32 %v200, 0.00390625
    %v225 = vmul.f32 %v203, 0.00390625
    %v226 = vmul.f32 %v206, 0.00390625
    %v227 = vmul.f32 %v209, 0.00390625
    %v228 = vmul.f32 %v212, 0.00390625
    %v229 = vld [vmem:[#allocation5] sm:$0xff]
    %v230 = vld [vmem:[#allocation5 + $0x8] sm:$0xff]
    %v231 = vld [vmem:[#allocation7] sm:$0xff]
    %v232 = vld [vmem:[#allocation7 + $0x8] sm:$0xff]
    %v249 = vlaneseq
    %v250 = vand.u32 %v249, 127
    %v251 = vlaneseq
    %v252 = vshrl.u32 %v251, 7
    %v253 = vsub.s32 %v250, %v252
    %v254 = vrot.slane %v213, %v253
    %v255 = vadd.s32 %v250, 4294967288
    %v256 = vlaneseq
    %v257 = vshrl.u32 %v256, 7
    %v258 = vsub.s32 %v255, %v257
    %v259 = vrot.slane %v214, %v258
    %vm260 = vcmask 130112
    %v261 = vsel %vm260, %v259, %v254
    %v262 = vlaneseq
    %v263 = vshrl.u32 %v262, 7
    %v264 = vsub.s32 %v250, %v263
    %v265 = vrot.slane %v215, %v264
    %v266 = vlaneseq
    %v267 = vshrl.u32 %v266, 7
    %v268 = vsub.s32 %v255, %v267
    %v269 = vrot.slane %v216, %v268
    %v270 = vsel %vm260, %v269, %v265
    %v271 = vlaneseq
    %v272 = vshrl.u32 %v271, 7
    %v273 = vsub.s32 %v250, %v272
    %v274 = vrot.slane %v217, %v273
    %v275 = vlaneseq
    %v276 = vshrl.u32 %v275, 7
    %v277 = vsub.s32 %v255, %v276
    %v278 = vrot.slane %v218, %v277
    %v279 = vsel %vm260, %v278, %v274
    %v280 = vlaneseq
    %v281 = vshrl.u32 %v280, 7
    %v282 = vsub.s32 %v250, %v281
    %v283 = vrot.slane %v219, %v282
    %v284 = vlaneseq
    %v285 = vshrl.u32 %v284, 7
    %v286 = vsub.s32 %v255, %v285
    %v287 = vrot.slane %v220, %v286
    %v288 = vsel %vm260, %v287, %v283
    %v289 = vlaneseq
    %v290 = vshrl.u32 %v289, 7
    %v291 = vsub.s32 %v250, %v290
    %v292 = vrot.slane %v221, %v291
    %v293 = vlaneseq
    %v294 = vshrl.u32 %v293, 7
    %v295 = vsub.s32 %v255, %v294
    %v296 = vrot.slane %v222, %v295
    %v297 = vsel %vm260, %v296, %v292
    %v298 = vlaneseq
    %v299 = vshrl.u32 %v298, 7
    %v300 = vsub.s32 %v250, %v299
    %v301 = vrot.slane %v223, %v300
    %v302 = vlaneseq
    %v303 = vshrl.u32 %v302, 7
    %v304 = vsub.s32 %v255, %v303
    %v305 = vrot.slane %v224, %v304
    %v306 = vsel %vm260, %v305, %v301
    %v307 = vlaneseq
    %v308 = vshrl.u32 %v307, 7
    %v309 = vsub.s32 %v250, %v308
    %v310 = vrot.slane %v225, %v309
    %v311 = vlaneseq
    %v312 = vshrl.u32 %v311, 7
    %v313 = vsub.s32 %v255, %v312
    %v314 = vrot.slane %v226, %v313
    %v315 = vsel %vm260, %v314, %v310
    %v316 = vlaneseq
    %v317 = vshrl.u32 %v316, 7
    %v318 = vsub.s32 %v250, %v317
    %v319 = vrot.slane %v227, %v318
    %v320 = vlaneseq
    %v321 = vshrl.u32 %v320, 7
    %v322 = vsub.s32 %v255, %v321
    %v323 = vrot.slane %v228, %v322
    %v324 = vsel %vm260, %v323, %v319
    %vm325 = vcmask 1041409
    %v326 = vsel %vm325, %v270, %v261
    %vm327 = vcmask 1042434
    %v328 = vsel %vm327, %v279, %v326
    %vm329 = vcmask 1043459
    %v330 = vsel %vm329, %v288, %v328
    %vm331 = vcmask 1044484
    %v332 = vsel %vm331, %v297, %v330
    %vm333 = vcmask 1045509
    %v334 = vsel %vm333, %v306, %v332
    %vm335 = vcmask 1046534
    %v336 = vsel %vm335, %v315, %v334
    %vm337 = vcmask 1047559
    %v338 = vsel %vm337, %v324, %v336
    %vm339 = vcmask 130048
    %v340 = vsel %vm339, %v338, 0
    %342 = vmatprep.subr.mxu0 0.0
    %343 = vmatpush1.msra.mxu0 %v231
    %344 = vmatprep.subr.mxu0 0.0
    %345 = vmatpush1.msra.mxu0 %v232
    %346 = vmatprep.subr.mxu0 0.0
    %347 = vmatpush1.msra.mxu0 0.0
    %348 = vmatprep.subr.mxu0 0.0
    %349 = vmatpush1.msra.mxu0 0.0
    %350 = vmatprep.subr.mxu0 0.0
    %351 = vmatpush1.msra.mxu0 0.0
    %352 = vmatprep.subr.mxu0 0.0
    %353 = vmatpush1.msra.mxu0 0.0
    %354 = vmatprep.subr.mxu0 0.0
    %355 = vmatpush1.msra.mxu0 0.0
    %356 = vmatprep.subr.mxu0 0.0
    %357 = vmatpush1.msra.mxu0 0.0
    %358 = vmatprep.subr.mxu0 0.0
    %359 = vmatpush1.msra.mxu0 0.0
    %360 = vmatprep.subr.mxu0 0.0
    %361 = vmatpush1.msra.mxu0 0.0
    %362 = vmatprep.subr.mxu0 0.0
    %363 = vmatpush1.msra.mxu0 0.0
    %364 = vmatprep.subr.mxu0 0.0
    %365 = vmatpush1.msra.mxu0 0.0
    %366 = vmatprep.subr.mxu0 0.0
    %367 = vmatpush1.msra.mxu0 0.0
    %368 = vmatprep.subr.mxu0 0.0
    %369 = vmatpush1.msra.mxu0 0.0
    %370 = vmatprep.subr.mxu0 0.0
    %371 = vmatpush1.msra.mxu0 0.0
    %372 = vmatprep.subr.mxu0 0.0
    %373 = vmatpush1.msra.mxu0 0.0
    %374 = vmatprep.subr.mxu0 0.0
    %375 = vmatpush1.msra.mxu0 0.0
    %376 = vmatprep.subr.mxu0 0.0
    %377 = vmatpush1.msra.mxu0 0.0
    %378 = vmatprep.subr.mxu0 0.0
    %379 = vmatpush1.msra.mxu0 0.0
    %380 = vmatprep.subr.mxu0 0.0
    %381 = vmatpush1.msra.mxu0 0.0
    %382 = vmatprep.subr.mxu0 0.0
    %383 = vmatpush1.msra.mxu0 0.0
    %384 = vmatprep.subr.mxu0 0.0
    %385 = vmatpush1.msra.mxu0 0.0
    %386 = vmatprep.subr.mxu0 0.0
    %387 = vmatpush1.msra.mxu0 0.0
    %388 = vmatprep.subr.mxu0 0.0
    %389 = vmatpush1.msra.mxu0 0.0
    %390 = vmatprep.subr.mxu0 0.0
    %391 = vmatpush1.msra.mxu0 0.0
    %392 = vmatprep.subr.mxu0 0.0
    %393 = vmatpush1.msra.mxu0 0.0
    %394 = vmatprep.subr.mxu0 0.0
    %395 = vmatpush1.msra.mxu0 0.0
    %396 = vmatprep.subr.mxu0 0.0
    %397 = vmatpush1.msra.mxu0 0.0
    %398 = vmatprep.subr.mxu0 0.0
    %399 = vmatpush1.msra.mxu0 0.0
    %400 = vmatprep.subr.mxu0 0.0
    %401 = vmatpush1.msra.mxu0 0.0
    %402 = vmatprep.subr.mxu0 0.0
    %403 = vmatpush1.msra.mxu0 0.0
    %404 = vmatprep.subr.mxu0 0.0
    %405 = vmatpush1.msra.mxu0 0.0
    %406 = vmatprep.mubr.f32.mxu0 0.0
    %407 = vmatmul.mubr.f32.gmra.mrb[0].mxu0 %v340
    %v408 = vpop.f32.mrb[0].mxu0
    %v409 = vadd.f32 0.0, %v408
    %v410 = vpop.f32.mrb[0].mxu0
    %411 = vdwg.mxu0
    %v428 = vlaneseq
    %v429 = vshrl.u32 %v428, 7
    %v430 = vsub.s32 %v250, %v429
    %v431 = vrot.slane %v119, %v430
    %v432 = vlaneseq
    %v433 = vshrl.u32 %v432, 7
    %v434 = vsub.s32 %v255, %v433
    %v435 = vrot.slane %v122, %v434
    %v436 = vsel %vm260, %v435, %v431
    %v437 = vlaneseq
    %v438 = vshrl.u32 %v437, 7
    %v439 = vsub.s32 %v250, %v438
    %v440 = vrot.slane %v125, %v439
    %v441 = vlaneseq
    %v442 = vshrl.u32 %v441, 7
    %v443 = vsub.s32 %v255, %v442
    %v444 = vrot.slane %v128, %v443
    %v445 = vsel %vm260, %v444, %v440
    %v446 = vlaneseq
    %v447 = vshrl.u32 %v446, 7
    %v448 = vsub.s32 %v250, %v447
    %v449 = vrot.slane %v131, %v448
    %v450 = vlaneseq
    %v451 = vshrl.u32 %v450, 7
    %v452 = vsub.s32 %v255, %v451
    %v453 = vrot.slane %v134, %v452
    %v454 = vsel %vm260, %v453, %v449
    %v455 = vlaneseq
    %v456 = vshrl.u32 %v455, 7
    %v457 = vsub.s32 %v250, %v456
    %v458 = vrot.slane %v137, %v457
    %v459 = vlaneseq
    %v460 = vshrl.u32 %v459, 7
    %v461 = vsub.s32 %v255, %v460
    %v462 = vrot.slane %v140, %v461
    %v463 = vsel %vm260, %v462, %v458
    %v464 = vlaneseq
    %v465 = vshrl.u32 %v464, 7
    %v466 = vsub.s32 %v250, %v465
    %v467 = vrot.slane %v143, %v466
    %v468 = vlaneseq
    %v469 = vshrl.u32 %v468, 7
    %v470 = vsub.s32 %v255, %v469
    %v471 = vrot.slane %v146, %v470
    %v472 = vsel %vm260, %v471, %v467
    %v473 = vlaneseq
    %v474 = vshrl.u32 %v473, 7
    %v475 = vsub.s32 %v250, %v474
    %v476 = vrot.slane %v149, %v475
    %v477 = vlaneseq
    %v478 = vshrl.u32 %v477, 7
    %v479 = vsub.s32 %v255, %v478
    %v480 = vrot.slane %v152, %v479
    %v481 = vsel %vm260, %v480, %v476
    %v482 = vlaneseq
    %v483 = vshrl.u32 %v482, 7
    %v484 = vsub.s32 %v250, %v483
    %v485 = vrot.slane %v155, %v484
    %v486 = vlaneseq
    %v487 = vshrl.u32 %v486, 7
    %v488 = vsub.s32 %v255, %v487
    %v489 = vrot.slane %v158, %v488
    %v490 = vsel %vm260, %v489, %v485
    %v491 = vlaneseq
    %v492 = vshrl.u32 %v491, 7
    %v493 = vsub.s32 %v250, %v492
    %v494 = vrot.slane %v161, %v493
    %v495 = vlaneseq
    %v496 = vshrl.u32 %v495, 7
    %v497 = vsub.s32 %v255, %v496
    %v498 = vrot.slane %v164, %v497
    %v499 = vsel %vm260, %v498, %v494
    %v500 = vsel %vm325, %v445, %v436
    %v501 = vsel %vm327, %v454, %v500
    %v502 = vsel %vm329, %v463, %v501
    %v503 = vsel %vm331, %v472, %v502
    %v504 = vsel %vm333, %v481, %v503
    %v505 = vsel %vm335, %v490, %v504
    %v506 = vsel %vm337, %v499, %v505
    %v507 = vsel %vm339, %v506, 0
    %509 = vmatprep.subr.mxu0 0.0
    %510 = vmatpush1.msra.mxu0 %v229
    %511 = vmatprep.subr.mxu0 0.0
    %512 = vmatpush1.msra.mxu0 %v230
    %513 = vmatprep.subr.mxu0 0.0
    %514 = vmatpush1.msra.mxu0 0.0
    %515 = vmatprep.subr.mxu0 0.0
    %516 = vmatpush1.msra.mxu0 0.0
    %517 = vmatprep.subr.mxu0 0.0
    %518 = vmatpush1.msra.mxu0 0.0
    %519 = vmatprep.subr.mxu0 0.0
    %520 = vmatpush1.msra.mxu0 0.0
    %521 = vmatprep.subr.mxu0 0.0
    %522 = vmatpush1.msra.mxu0 0.0
    %523 = vmatprep.subr.mxu0 0.0
    %524 = vmatpush1.msra.mxu0 0.0
    %525 = vmatprep.subr.mxu0 0.0
    %526 = vmatpush1.msra.mxu0 0.0
    %527 = vmatprep.subr.mxu0 0.0
    %528 = vmatpush1.msra.mxu0 0.0
    %529 = vmatprep.subr.mxu0 0.0
    %530 = vmatpush1.msra.mxu0 0.0
    %531 = vmatprep.subr.mxu0 0.0
    %532 = vmatpush1.msra.mxu0 0.0
    %533 = vmatprep.subr.mxu0 0.0
    %534 = vmatpush1.msra.mxu0 0.0
    %535 = vmatprep.subr.mxu0 0.0
    %536 = vmatpush1.msra.mxu0 0.0
    %537 = vmatprep.subr.mxu0 0.0
    %538 = vmatpush1.msra.mxu0 0.0
    %539 = vmatprep.subr.mxu0 0.0
    %540 = vmatpush1.msra.mxu0 0.0
    %541 = vmatprep.subr.mxu0 0.0
    %542 = vmatpush1.msra.mxu0 0.0
    %543 = vmatprep.subr.mxu0 0.0
    %544 = vmatpush1.msra.mxu0 0.0
    %545 = vmatprep.subr.mxu0 0.0
    %546 = vmatpush1.msra.mxu0 0.0
    %547 = vmatprep.subr.mxu0 0.0
    %548 = vmatpush1.msra.mxu0 0.0
    %549 = vmatprep.subr.mxu0 0.0
    %550 = vmatpush1.msra.mxu0 0.0
    %551 = vmatprep.subr.mxu0 0.0
    %552 = vmatpush1.msra.mxu0 0.0
    %553 = vmatprep.subr.mxu0 0.0
    %554 = vmatpush1.msra.mxu0 0.0
    %555 = vmatprep.subr.mxu0 0.0
    %556 = vmatpush1.msra.mxu0 0.0
    %557 = vmatprep.subr.mxu0 0.0
    %558 = vmatpush1.msra.mxu0 0.0
    %559 = vmatprep.subr.mxu0 0.0
    %560 = vmatpush1.msra.mxu0 0.0
    %561 = vmatprep.subr.mxu0 0.0
    %562 = vmatpush1.msra.mxu0 0.0
    %563 = vmatprep.subr.mxu0 0.0
    %564 = vmatpush1.msra.mxu0 0.0
    %565 = vmatprep.subr.mxu0 0.0
    %566 = vmatpush1.msra.mxu0 0.0
    %567 = vmatprep.subr.mxu0 0.0
    %568 = vmatpush1.msra.mxu0 0.0
    %569 = vmatprep.subr.mxu0 0.0
    %570 = vmatpush1.msra.mxu0 0.0
    %571 = vmatprep.subr.mxu0 0.0
    %572 = vmatpush1.msra.mxu0 0.0
    %573 = vmatprep.mubr.f32.mxu0 0.0
    %574 = vmatmul.mubr.f32.gmra.mrb[0].mxu0 %v507
    %v575 = vpop.f32.mrb[0].mxu0
    %v576 = vadd.f32 %v409, %v575
    %v577 = vpop.f32.mrb[0].mxu0
    %578 = vdwg.mxu0
    %v579 = vld [vmem:[%s3] sm:$0x1]
    %v581 = vlaneseq
    %v582 = vshrl.u32 %v581, 7
    %v583 = vsub.s32 0, %v582
    %v584 = vrot.slane %v579, %v583
    %v586 = vadd.f32 %v576, %v584
    %v587 = vmax.f32 %v586, 0.0
    %v588 = vld [vmem:[#allocation8] sm:$0xff]
    %v589 = vld [vmem:[#allocation8 + $0x8] sm:$0xff]
    %v590 = vld [vmem:[%s5] sm:$0x1]
    %v592 = vlaneseq
    %v593 = vshrl.u32 %v592, 7
    %v594 = vsub.s32 0, %v593
    %v595 = vrot.slane %v590, %v594
    %v598 = vsel %vm339, %v587, 0
    %600 = vmatprep.subr.mxu0 0.0
    %601 = vmatpush1.msra.mxu0 %v588
    %602 = vmatprep.subr.mxu0 0.0
    %603 = vmatpush1.msra.mxu0 %v589
    %604 = vmatprep.subr.mxu0 0.0
    %605 = vmatpush1.msra.mxu0 0.0
    %606 = vmatprep.subr.mxu0 0.0
    %607 = vmatpush1.msra.mxu0 0.0
    %608 = vmatprep.subr.mxu0 0.0
    %609 = vmatpush1.msra.mxu0 0.0
    %610 = vmatprep.subr.mxu0 0.0
    %611 = vmatpush1.msra.mxu0 0.0
    %612 = vmatprep.subr.mxu0 0.0
    %613 = vmatpush1.msra.mxu0 0.0
    %614 = vmatprep.subr.mxu0 0.0
    %615 = vmatpush1.msra.mxu0 0.0
    %616 = vmatprep.subr.mxu0 0.0
    %617 = vmatpush1.msra.mxu0 0.0
    %618 = vmatprep.subr.mxu0 0.0
    %619 = vmatpush1.msra.mxu0 0.0
    %620 = vmatprep.subr.mxu0 0.0
    %621 = vmatpush1.msra.mxu0 0.0
    %622 = vmatprep.subr.mxu0 0.0
    %623 = vmatpush1.msra.mxu0 0.0
    %624 = vmatprep.subr.mxu0 0.0
    %625 = vmatpush1.msra.mxu0 0.0
    %626 = vmatprep.subr.mxu0 0.0
    %627 = vmatpush1.msra.mxu0 0.0
    %628 = vmatprep.subr.mxu0 0.0
    %629 = vmatpush1.msra.mxu0 0.0
    %630 = vmatprep.subr.mxu0 0.0
    %631 = vmatpush1.msra.mxu0 0.0
    %632 = vmatprep.subr.mxu0 0.0
    %633 = vmatpush1.msra.mxu0 0.0
    %634 = vmatprep.subr.mxu0 0.0
    %635 = vmatpush1.msra.mxu0 0.0
    %636 = vmatprep.subr.mxu0 0.0
    %637 = vmatpush1.msra.mxu0 0.0
    %638 = vmatprep.subr.mxu0 0.0
    %639 = vmatpush1.msra.mxu0 0.0
    %640 = vmatprep.subr.mxu0 0.0
    %641 = vmatpush1.msra.mxu0 0.0
    %642 = vmatprep.subr.mxu0 0.0
    %643 = vmatpush1.msra.mxu0 0.0
    %644 = vmatprep.subr.mxu0 0.0
    %645 = vmatpush1.msra.mxu0 0.0
    %646 = vmatprep.subr.mxu0 0.0
    %647 = vmatpush1.msra.mxu0 0.0
    %648 = vmatprep.subr.mxu0 0.0
    %649 = vmatpush1.msra.mxu0 0.0
    %650 = vmatprep.subr.mxu0 0.0
    %651 = vmatpush1.msra.mxu0 0.0
    %652 = vmatprep.subr.mxu0 0.0
    %653 = vmatpush1.msra.mxu0 0.0
    %654 = vmatprep.subr.mxu0 0.0
    %655 = vmatpush1.msra.mxu0 0.0
    %656 = vmatprep.subr.mxu0 0.0
    %657 = vmatpush1.msra.mxu0 0.0
    %658 = vmatprep.subr.mxu0 0.0
    %659 = vmatpush1.msra.mxu0 0.0
    %660 = vmatprep.subr.mxu0 0.0
    %661 = vmatpush1.msra.mxu0 0.0
    %662 = vmatprep.subr.mxu0 0.0
    %663 = vmatpush1.msra.mxu0 0.0
    %664 = vmatprep.mubr.f32.mxu0 0.0
    %665 = vmatmul.mubr.f32.gmra.mrb[0].mxu0 %v598
    %v666 = vpop.f32.mrb[0].mxu0
    %v667 = vadd.f32 %v595, %v666
    %v668 = vpop.f32.mrb[0].mxu0
    %669 = vdwg.mxu0
    %v670 = vmax.f32 %v667, 0.0
    %v671 = vld [vmem:[%s6] sm:$0xff]
    %v672 = vld [vmem:[%s6 + $0x8] sm:$0xff]
    %v673 = vld [vmem:[%s7] sm:$0x1]
    %v675 = vlaneseq
    %v676 = vshrl.u32 %v675, 7
    %v677 = vsub.s32 0, %v676
    %v678 = vrot.slane %v673, %v677
    %v681 = vsel %vm339, %v670, 0
    %683 = vmatprep.subr.mxu0 0.0
    %684 = vmatpush1.msra.mxu0 %v671
    %685 = vmatprep.subr.mxu0 0.0
    %686 = vmatpush1.msra.mxu0 %v672
    %687 = vmatprep.subr.mxu0 0.0
    %688 = vmatpush1.msra.mxu0 0.0
    %689 = vmatprep.subr.mxu0 0.0
    %690 = vmatpush1.msra.mxu0 0.0
    %691 = vmatprep.subr.mxu0 0.0
    %692 = vmatpush1.msra.mxu0 0.0
    %693 = vmatprep.subr.mxu0 0.0
    %694 = vmatpush1.msra.mxu0 0.0
    %695 = vmatprep.subr.mxu0 0.0
    %696 = vmatpush1.msra.mxu0 0.0
    %697 = vmatprep.subr.mxu0 0.0
    %698 = vmatpush1.msra.mxu0 0.0
    %699 = vmatprep.subr.mxu0 0.0
    %700 = vmatpush1.msra.mxu0 0.0
    %701 = vmatprep.subr.mxu0 0.0
    %702 = vmatpush1.msra.mxu0 0.0
    %703 = vmatprep.subr.mxu0 0.0
    %704 = vmatpush1.msra.mxu0 0.0
    %705 = vmatprep.subr.mxu0 0.0
    %706 = vmatpush1.msra.mxu0 0.0
    %707 = vmatprep.subr.mxu0 0.0
    %708 = vmatpush1.msra.mxu0 0.0
    %709 = vmatprep.subr.mxu0 0.0
    %710 = vmatpush1.msra.mxu0 0.0
    %711 = vmatprep.subr.mxu0 0.0
    %712 = vmatpush1.msra.mxu0 0.0
    %713 = vmatprep.subr.mxu0 0.0
    %714 = vmatpush1.msra.mxu0 0.0
    %715 = vmatprep.subr.mxu0 0.0
    %716 = vmatpush1.msra.mxu0 0.0
    %717 = vmatprep.subr.mxu0 0.0
    %718 = vmatpush1.msra.mxu0 0.0
    %719 = vmatprep.subr.mxu0 0.0
    %720 = vmatpush1.msra.mxu0 0.0
    %721 = vmatprep.subr.mxu0 0.0
    %722 = vmatpush1.msra.mxu0 0.0
    %723 = vmatprep.subr.mxu0 0.0
    %724 = vmatpush1.msra.mxu0 0.0
    %725 = vmatprep.subr.mxu0 0.0
    %726 = vmatpush1.msra.mxu0 0.0
    %727 = vmatprep.subr.mxu0 0.0
    %728 = vmatpush1.msra.mxu0 0.0
    %729 = vmatprep.subr.mxu0 0.0
    %730 = vmatpush1.msra.mxu0 0.0
    %731 = vmatprep.subr.mxu0 0.0
    %732 = vmatpush1.msra.mxu0 0.0
    %733 = vmatprep.subr.mxu0 0.0
    %734 = vmatpush1.msra.mxu0 0.0
    %735 = vmatprep.subr.mxu0 0.0
    %736 = vmatpush1.msra.mxu0 0.0
    %737 = vmatprep.subr.mxu0 0.0
    %738 = vmatpush1.msra.mxu0 0.0
    %739 = vmatprep.subr.mxu0 0.0
    %740 = vmatpush1.msra.mxu0 0.0
    %741 = vmatprep.subr.mxu0 0.0
    %742 = vmatpush1.msra.mxu0 0.0
    %743 = vmatprep.subr.mxu0 0.0
    %744 = vmatpush1.msra.mxu0 0.0
    %745 = vmatprep.subr.mxu0 0.0
    %746 = vmatpush1.msra.mxu0 0.0
    %747 = vmatprep.mubr.f32.mxu0 0.0
    %748 = vmatmul.mubr.f32.gmra.mrb[0].mxu0 %v681
    %v749 = vpop.f32.mrb[0].mxu0
    %v750 = vadd.f32 %v678, %v749
    %v751 = vpop.f32.mrb[0].mxu0
    %752 = vdwg.mxu0
    %v753 = vxor.u32 %v750, 2147483648
    %v754 = vmul.f32 %v753, 1.442695
    %v755 = vpow.pop %v754
    %v756 = vadd.f32 %v755, 1.0
    %v757 = vrcp.pop %v756
    %v758 = vmul.f32 1.0, %v757
    %v759 = vmul.f32 %v758, 5.0
    %v760 = vadd.f32 %v759, 0.0
    %761 = vst [vmem:[#allocation10] sm:$0xff] %v760
    // Predicated region
    $region50: #{tpu_custom_call.1} parent=1 // pred_check
      _
    $region51: #{tpu_custom_call.1} parent=1 // pred_check_branch
      %763 = sbr.rel (0) target = $region53
    $region52: #{tpu_custom_call.1} parent=1 // pred_region
      %s765 = ssub.s32 128, 32
      %766 = vsyncadd [#allocation4], %s765
      %s767 = sshll.u32 [#allocation10], 4
      %s768 = int_to_ptr.vmem [resolvable:$true] %s767
      %773 = dma.vmem_to_hbm [thread:$0]  %s768, 32, %s8, [#allocation4], 32, 32, 2
    $region53: #{tpu_custom_call.1} parent=1 // pred_fallthru
      _
    // Predicated region
    $region54: #{tpu_custom_call.1} parent=1 // pred_check
      _
    $region55: #{tpu_custom_call.1} parent=1 // pred_check_branch
      %775 = sbr.rel (0) target = $region57
    $region56: #{tpu_custom_call.1} parent=1 // pred_region
      %776 = dma.done [#allocation4], 128
    $region57: #{tpu_custom_call.1} parent=1 // pred_fallthru
      _
    %777 = vsyncpa [#allocation3], 1
    %778 = vsyncpa [#allocation6], 1
    %779 = vsyncpa [#allocation9], 1
    %780 = vsyncpa [#allocation4], 1

</llo_original>
